<compile_context>
chip_gen: v7x
topology: tpu7x:2x2x1
jax: 0.10.0
libtpu: 0.0.40
codegen_flags: <defaults>
</compile_context>

<pallas_src>
import math

import jax
import jax.numpy as jnp
from jax.experimental import pallas as pl
from jax.experimental.pallas import tpu as pltpu

_LANES = 128


def _drop_path22_kernel(m_ref,                      # (tile_b, 1, 1) mask, activation dtype
                        x1_ref, x2_ref, x3_ref, x4_ref,
                        o1_ref, o2_ref, o3_ref, o4_ref):
    m = m_ref[...]                                  # load once, reuse for all four tensors
    o1_ref[...] = x1_ref[...] * m
    o2_ref[...] = x2_ref[...] * m
    o3_ref[...] = x3_ref[...] * m
    o4_ref[...] = x4_ref[...] * m


def _target_block_bytes() -> int:
    """Per-tensor block byte target, chosen per TPU generation."""
    try:
        kind = jax.devices()[0].device_kind.lower()
    except Exception:
        kind = ""
    if "v5" in kind:
        return 512 << 10     # v5e: stay comfortably inside 16 MiB default scoped VMEM
    if "v7" in kind:
        return 2 << 20       # v7x: 3.2 TB/s HBM -> bigger steps; 64 MiB physical VMEM
    return 1 << 20           # v6e and others


def _pick_tiles(B, R, itemsize, target_bytes):
    """Pick (tile_b, tile_r) for a (tile_b, tile_r, 128) block of ~target_bytes."""
    group = 8 * max(1, 4 // itemsize)        # sublane packing: 8 f32, 16 bf16, 32 int8
    per_sample = R * _LANES * itemsize
    if per_sample >= target_bytes:
        rows = (target_bytes // (_LANES * itemsize)) // group * group
        tile_r = min(max(rows, group), R)    # multiple of `group`, or the full R dim
        tile_b = 1
    else:
        tile_r = R                           # full per-sample payload per block
        tile_b = max(1, min(B, target_bytes // per_sample))
    return tile_b, tile_r


def _drop_path22_pallas(mask, xs):
    """mask: (B,) f32 keep/scale factors; xs: 4 tensors of identical shape/dtype (B, ...)."""
    x1 = xs[0]
    B = x1.shape[0]
    dtype = x1.dtype
    itemsize = jnp.dtype(dtype).itemsize
    L = math.prod(x1.shape[1:])              # elements per sample

    # Lane-dense view (B, R, 128): zero-copy reshape if L % 128 == 0, else pad.
    R = (L + _LANES - 1) // _LANES
    L_pad = R * _LANES
    ragged = (L_pad != L)

    def to_lane_dense(x):
        x = x.reshape(B, L)
        if ragged:
            x = jnp.pad(x, ((0, 0), (0, L_pad - L)))
        return x.reshape(B, R, _LANES)

    xs_ld = [to_lane_dense(x) for x in xs]
    mask_ld = mask.astype(dtype).reshape(B, 1, 1)

    tile_b, tile_r = _pick_tiles(B, R, itemsize, _target_block_bytes())
    nb = pl.cdiv(B, tile_b)
    nr = pl.cdiv(R, tile_r)

    # Larger grid axis first keeps megacore (v7x) sharding balanced for tiny B.
    if nr >= nb:
        grid = (nr, nb)
        x_idx = lambda r, b: (b, r, 0)
        m_idx = lambda r, b: (b, 0, 0)
    else:
        grid = (nb, nr)
        x_idx = lambda b, r: (b, r, 0)
        m_idx = lambda b, r: (b, 0, 0)

    xspec = pl.BlockSpec((tile_b, tile_r, _LANES), x_idx)
    mspec = pl.BlockSpec((tile_b, 1, 1), m_idx)
    out_sd = jax.ShapeDtypeStruct((B, R, _LANES), dtype)

    block_bytes = tile_b * tile_r * _LANES * itemsize
    # 8 tensor refs (4 in + 4 out), double-buffered, plus slack for internal scratch.
    vmem_limit = min(max(16 << 20, 16 * block_bytes + (8 << 20)), 48 << 20)

    # TODO(synk): add input_output_aliases={1:0, 2:1, 3:2, 4:3} when callers donate inputs.
    outs = pl.pallas_call(
        _drop_path22_kernel,
        out_shape=(out_sd, out_sd, out_sd, out_sd),
        grid=grid,
        in_specs=[mspec, xspec, xspec, xspec, xspec],
        out_specs=(xspec, xspec, xspec, xspec),
        compiler_params=pltpu.CompilerParams(
            dimension_semantics=("parallel", "parallel"),
            vmem_limit_bytes=int(vmem_limit)),
    )(mask_ld, *xs_ld)

    def from_lane_dense(y, orig_shape):
        y = y.reshape(B, L_pad)
        if ragged:
            y = y[:, :L]
        return y.reshape(orig_shape)

    return tuple(from_lane_dense(y, x.shape) for y, x in zip(outs, xs))


class DropPath22:
    """JAX/Pallas port of the PyTorch DropPath22 module (stochastic depth, 4 tensors)."""

    def __init__(self, drop_prob: float = 0.0, scale_by_keep: bool = True,
                 min_elems_for_pallas: int = 1 << 16):
        self.drop_prob = float(drop_prob)
        self.scale_by_keep = scale_by_keep
        self.training = True
        # Below this per-tensor element count a fused XLA multiply beats the
        # pallas_call launch + per-step overhead; set to 0 to force the kernel.
        self.min_elems_for_pallas = min_elems_for_pallas

    def __call__(self, xs, rng_key):
        if self.drop_prob == 0.0 or not self.training:
            return xs
        x1, x2, x3, x4 = xs
        keep_prob = 1.0 - self.drop_prob
        B = x1.shape[0]
        # Per-sample Bernoulli keep mask, shared by all four tensors.
        # TODO(synk): statistically equivalent to torch's bernoulli_ but not bitwise
        # reproducible against the original torch RNG stream.
        mask = jax.random.bernoulli(rng_key, p=keep_prob, shape=(B,)).astype(jnp.float32)
        if keep_prob > 0.0 and self.scale_by_keep:
            mask = mask / keep_prob

        same = all(x.shape == x1.shape and x.dtype == x1.dtype for x in xs)
        big_enough = math.prod(x1.shape) >= self.min_elems_for_pallas
        if same and big_enough:
            return _drop_path22_pallas(mask, (x1, x2, x3, x4))

        # Fallback: tiny tensors or heterogeneous shapes/dtypes -> broadcast multiply.
        return tuple(
            x * mask.astype(x.dtype).reshape((B,) + (1,) * (x.ndim - 1)) for x in xs)


if __name__ == "__main__":
    key = jax.random.PRNGKey(0)
    k1, k2, k3, k4, kmask = jax.random.split(key, 5)

    module = DropPath22(drop_prob=0.25, scale_by_keep=True, min_elems_for_pallas=0)
    module.training = True
    keep_prob = 1.0 - module.drop_prob

    B = 2
    mask = jax.random.bernoulli(kmask, p=keep_prob, shape=(B,)).astype(jnp.float32)

    def ref_outputs(xs):
        out = []
        for x in xs:
            m = (mask / keep_prob).astype(x.dtype)
            out.append(x * m.reshape((B,) + (1,) * (x.ndim - 1)))
        return tuple(out)

    # --- Case 1: (B, N, D) = (2, 8, 32), f32; L = 256 -> zero-copy reshape path.
    xs = tuple(jax.random.normal(k, (B, 8, 32), dtype=jnp.float32)
               for k in (k1, k2, k3, k4))
    ys = module(xs, kmask)
    jax.block_until_ready(ys)
    for y, r in zip(ys, ref_outputs(xs)):
        assert jnp.allclose(y, r, atol=1e-6), "f32 mismatch"

    # --- Case 2: (2, 16, 128), bf16 -> lane-aligned, packed-dtype path.
    xs_b = tuple(jax.random.normal(k, (B, 16, 128), dtype=jnp.float32).astype(jnp.bfloat16)
                 for k in (k1, k2, k3, k4))
    ys_b = module(xs_b, kmask)
    jax.block_until_ready(ys_b)
    for y, r in zip(ys_b, ref_outputs(xs_b)):
        assert jnp.allclose(y.astype(jnp.float32), r.astype(jnp.float32)), "bf16 mismatch"

    # --- Case 3: ragged L: (2, 3, 40) -> L = 120, exercises the pad path.
    xs_r = tuple(jax.random.normal(k, (B, 3, 40), dtype=jnp.float32)
                 for k in (k1, k2, k3, k4))
    ys_r = module(xs_r, kmask)
    jax.block_until_ready(ys_r)
    for y, r in zip(ys_r, ref_outputs(xs_r)):
        assert jnp.allclose(y, r, atol=1e-6), "ragged mismatch"

    # --- Case 4: eval path is identity.
    module.training = False
    zs = module(xs, kmask)
    assert zs[0] is xs[0]

    print("KERNEL_OK")
</pallas_src>

<mosaic_0001>
module attributes {stable_mosaic.version = 11 : i64} {
  func.func @_drop_path22_kernel(%arg0: i32, %arg1: i32, %arg2: memref<2x1x1xf32, #tpu.memory_space<vmem>>, %arg3: memref<2x2x128xf32, #tpu.memory_space<vmem>>, %arg4: memref<2x2x128xf32, #tpu.memory_space<vmem>>, %arg5: memref<2x2x128xf32, #tpu.memory_space<vmem>>, %arg6: memref<2x2x128xf32, #tpu.memory_space<vmem>>, %arg7: memref<2x2x128xf32, #tpu.memory_space<vmem>>, %arg8: memref<2x2x128xf32, #tpu.memory_space<vmem>>, %arg9: memref<2x2x128xf32, #tpu.memory_space<vmem>>, %arg10: memref<2x2x128xf32, #tpu.memory_space<vmem>>) attributes {dimension_semantics = [#tpu.dimension_semantics<parallel>, #tpu.dimension_semantics<parallel>], iteration_bounds = array<i64: 1, 1>, scalar_prefetch = 0 : i64, scratch_operands = 0 : i64, tpu.core_type = #tpu.core_type<tc>, window_params = [{transform_indices = @transform_0, window_bounds = array<i64: 2, 1, 1>}, {transform_indices = @transform_1, window_bounds = array<i64: 2, 2, 128>}, {transform_indices = @transform_2, window_bounds = array<i64: 2, 2, 128>}, {transform_indices = @transform_3, window_bounds = array<i64: 2, 2, 128>}, {transform_indices = @transform_4, window_bounds = array<i64: 2, 2, 128>}, {transform_indices = @transform_5, window_bounds = array<i64: 2, 2, 128>}, {transform_indices = @transform_6, window_bounds = array<i64: 2, 2, 128>}, {transform_indices = @transform_7, window_bounds = array<i64: 2, 2, 128>}, {transform_indices = @transform_8, window_bounds = array<i64: 2, 2, 128>}]} {
    %c0 = arith.constant 0 : index
    %c0_0 = arith.constant 0 : index
    %c0_1 = arith.constant 0 : index
    %0 = vector.load %arg2[%c0, %c0_0, %c0_1] : memref<2x1x1xf32, #tpu.memory_space<vmem>>, vector<2x1x1xf32>
    %c0_2 = arith.constant 0 : index
    %c0_3 = arith.constant 0 : index
    %c0_4 = arith.constant 0 : index
    %1 = vector.load %arg3[%c0_2, %c0_3, %c0_4] : memref<2x2x128xf32, #tpu.memory_space<vmem>>, vector<2x2x128xf32>
    %2 = vector.broadcast %0 : vector<2x1x1xf32> to vector<2x2x128xf32>
    %3 = arith.mulf %1, %2 : vector<2x2x128xf32>
    %c0_5 = arith.constant 0 : index
    %c0_6 = arith.constant 0 : index
    %c0_7 = arith.constant 0 : index
    %4 = vector.load %arg7[%c0_5, %c0_6, %c0_7] : memref<2x2x128xf32, #tpu.memory_space<vmem>>, vector<2x2x128xf32>
    tpu.vector_store %arg7[%c0_5, %c0_6, %c0_7], %3 {strides = array<i32>} : memref<2x2x128xf32, #tpu.memory_space<vmem>>, vector<2x2x128xf32>,
    %c0_8 = arith.constant 0 : index
    %c0_9 = arith.constant 0 : index
    %c0_10 = arith.constant 0 : index
    %5 = vector.load %arg4[%c0_8, %c0_9, %c0_10] : memref<2x2x128xf32, #tpu.memory_space<vmem>>, vector<2x2x128xf32>
    %6 = vector.broadcast %0 : vector<2x1x1xf32> to vector<2x2x128xf32>
    %7 = arith.mulf %5, %6 : vector<2x2x128xf32>
    %c0_11 = arith.constant 0 : index
    %c0_12 = arith.constant 0 : index
    %c0_13 = arith.constant 0 : index
    %8 = vector.load %arg8[%c0_11, %c0_12, %c0_13] : memref<2x2x128xf32, #tpu.memory_space<vmem>>, vector<2x2x128xf32>
    tpu.vector_store %arg8[%c0_11, %c0_12, %c0_13], %7 {strides = array<i32>} : memref<2x2x128xf32, #tpu.memory_space<vmem>>, vector<2x2x128xf32>,
    %c0_14 = arith.constant 0 : index
    %c0_15 = arith.constant 0 : index
    %c0_16 = arith.constant 0 : index
    %9 = vector.load %arg5[%c0_14, %c0_15, %c0_16] : memref<2x2x128xf32, #tpu.memory_space<vmem>>, vector<2x2x128xf32>
    %10 = vector.broadcast %0 : vector<2x1x1xf32> to vector<2x2x128xf32>
    %11 = arith.mulf %9, %10 : vector<2x2x128xf32>
    %c0_17 = arith.constant 0 : index
    %c0_18 = arith.constant 0 : index
    %c0_19 = arith.constant 0 : index
    %12 = vector.load %arg9[%c0_17, %c0_18, %c0_19] : memref<2x2x128xf32, #tpu.memory_space<vmem>>, vector<2x2x128xf32>
    tpu.vector_store %arg9[%c0_17, %c0_18, %c0_19], %11 {strides = array<i32>} : memref<2x2x128xf32, #tpu.memory_space<vmem>>, vector<2x2x128xf32>,
    %c0_20 = arith.constant 0 : index
    %c0_21 = arith.constant 0 : index
    %c0_22 = arith.constant 0 : index
    %13 = vector.load %arg6[%c0_20, %c0_21, %c0_22] : memref<2x2x128xf32, #tpu.memory_space<vmem>>, vector<2x2x128xf32>
    %14 = vector.broadcast %0 : vector<2x1x1xf32> to vector<2x2x128xf32>
    %15 = arith.mulf %13, %14 : vector<2x2x128xf32>
    %c0_23 = arith.constant 0 : index
    %c0_24 = arith.constant 0 : index
    %c0_25 = arith.constant 0 : index
    %16 = vector.load %arg10[%c0_23, %c0_24, %c0_25] : memref<2x2x128xf32, #tpu.memory_space<vmem>>, vector<2x2x128xf32>
    tpu.vector_store %arg10[%c0_23, %c0_24, %c0_25], %15 {strides = array<i32>} : memref<2x2x128xf32, #tpu.memory_space<vmem>>, vector<2x2x128xf32>,
    return
  }
  func.func @transform_0(%arg0: i32, %arg1: i32) -> (i32, i32, i32) {
    %c0_i32 = arith.constant 0 : i32
    %c0_i32_0 = arith.constant 0 : i32
    %c0_i32_1 = arith.constant 0 : i32
    return %arg1, %c0_i32, %c0_i32_0 : i32, i32, i32
  }
  func.func @transform_1(%arg0: i32, %arg1: i32) -> (i32, i32, i32) {
    %c0_i32 = arith.constant 0 : i32
    %c0_i32_0 = arith.constant 0 : i32
    return %arg1, %arg0, %c0_i32 : i32, i32, i32
  }
  func.func @transform_2(%arg0: i32, %arg1: i32) -> (i32, i32, i32) {
    %c0_i32 = arith.constant 0 : i32
    %c0_i32_0 = arith.constant 0 : i32
    return %arg1, %arg0, %c0_i32 : i32, i32, i32
  }
  func.func @transform_3(%arg0: i32, %arg1: i32) -> (i32, i32, i32) {
    %c0_i32 = arith.constant 0 : i32
    %c0_i32_0 = arith.constant 0 : i32
    return %arg1, %arg0, %c0_i32 : i32, i32, i32
  }
  func.func @transform_4(%arg0: i32, %arg1: i32) -> (i32, i32, i32) {
    %c0_i32 = arith.constant 0 : i32
    %c0_i32_0 = arith.constant 0 : i32
    return %arg1, %arg0, %c0_i32 : i32, i32, i32
  }
  func.func @transform_5(%arg0: i32, %arg1: i32) -> (i32, i32, i32) {
    %c0_i32 = arith.constant 0 : i32
    %c0_i32_0 = arith.constant 0 : i32
    return %arg1, %arg0, %c0_i32 : i32, i32, i32
  }
  func.func @transform_6(%arg0: i32, %arg1: i32) -> (i32, i32, i32) {
    %c0_i32 = arith.constant 0 : i32
    %c0_i32_0 = arith.constant 0 : i32
    return %arg1, %arg0, %c0_i32 : i32, i32, i32
  }
  func.func @transform_7(%arg0: i32, %arg1: i32) -> (i32, i32, i32) {
    %c0_i32 = arith.constant 0 : i32
    %c0_i32_0 = arith.constant 0 : i32
    return %arg1, %arg0, %c0_i32 : i32, i32, i32
  }
  func.func @transform_8(%arg0: i32, %arg1: i32) -> (i32, i32, i32) {
    %c0_i32 = arith.constant 0 : i32
    %c0_i32_0 = arith.constant 0 : i32
    return %arg1, %arg0, %c0_i32 : i32, i32, i32
  }
}

</mosaic_0001>

<llo_original>
// kernel: tpu_custom_call.1
$region0: #{tpu_custom_call.1}
  #allocation0 [shape = 'u32[]', space=smem, size = 0x4, offset = 0x4, fixed_abs, tag = 'smem constant byte address 0x4 - core index']
  #allocation1 [shape = 'u32[144,128]{1,0:T(1,128)}', space=vmem, size = 0x12000, scoped, tag = 'internal scratch']
  %s0 = inlined_call_operand.vmem [shape: f32[2,1,1], index: 0, kind: input, shape index: {}]
  %s1 = inlined_call_operand.vmem [shape: f32[2,2,128], index: 1, kind: input, shape index: {}]
  %s2 = inlined_call_operand.vmem [shape: f32[2,2,128], index: 2, kind: input, shape index: {}]
  %s3 = inlined_call_operand.vmem [shape: f32[2,2,128], index: 3, kind: input, shape index: {}]
  %s4 = inlined_call_operand.vmem [shape: f32[2,2,128], index: 4, kind: input, shape index: {}]
  %s5 = inlined_call_operand.hbm [shape: f32[2,2,128], index: 5, kind: output, shape index: {0}]
  %s6 = inlined_call_operand.hbm [shape: f32[2,2,128], index: 6, kind: output, shape index: {1}]
  %s7 = inlined_call_operand.hbm [shape: f32[2,2,128], index: 7, kind: output, shape index: {2}]
  %s8 = inlined_call_operand.hbm [shape: f32[2,2,128], index: 8, kind: output, shape index: {3}]
  %9 = xla_tuple %s5, %s6, %s7, %s8
  %s10 = sld [smem:[#allocation0]]
  $region54: #{tpu_custom_call.1} parent=0
    _
  %s12 = ssub.s32 1, %s10
  %s13 = scalar_select 0, %s12, %s10
  $region1: #{tpu_custom_call.1} parent=0
    #allocation2 [shape = 'u8[2048]{0}', space=vmem, size = 0x800, scoped, tag = 'output window, operand 0, single buffered']
    #allocation3 [shape = 's32[1]{0}', space=sflag, size = 0x4, scoped, tag = 'scoped memory for tpu_custom_call.1']
    #allocation4 [shape = 'u8[2048]{0}', space=vmem, size = 0x800, scoped, tag = 'output window, operand 1, single buffered']
    #allocation5 [shape = 's32[1]{0}', space=sflag, size = 0x4, scoped, tag = 'scoped memory for tpu_custom_call.1']
    #allocation6 [shape = 'u8[2048]{0}', space=vmem, size = 0x800, scoped, tag = 'output window, operand 2, single buffered']
    #allocation7 [shape = 'u8[2048]{0}', space=vmem, size = 0x800, scoped, tag = 'output window, operand 3, single buffered']
    #allocation8 [shape = 's32[1]{0}', space=sflag, size = 0x4, scoped, tag = 'scoped memory for tpu_custom_call.1']
    %14 = vsyncpa [#allocation3], 0
    %15 = vsyncpa [#allocation5], 0
    %16 = vsyncpa [#allocation8], 0
    // Predicated region
    $region2: #{tpu_custom_call.1} parent=1 // pred_check
      _
    $region3: #{tpu_custom_call.1} parent=1 // pred_check_branch
      %18 = sbr.rel (0) target = $region5
    $region4: #{tpu_custom_call.1} parent=1 // pred_region
      _
    $region5: #{tpu_custom_call.1} parent=1 // pred_fallthru
      _
    // Predicated region
    $region6: #{tpu_custom_call.1} parent=1 // pred_check
      _
    $region7: #{tpu_custom_call.1} parent=1 // pred_check_branch
      %20 = sbr.rel (0) target = $region9
    $region8: #{tpu_custom_call.1} parent=1 // pred_region
      _
    $region9: #{tpu_custom_call.1} parent=1 // pred_fallthru
      _
    // Predicated region
    $region10: #{tpu_custom_call.1} parent=1 // pred_check
      _
    $region11: #{tpu_custom_call.1} parent=1 // pred_check_branch
      %22 = sbr.rel (0) target = $region13
    $region12: #{tpu_custom_call.1} parent=1 // pred_region
      _
    $region13: #{tpu_custom_call.1} parent=1 // pred_fallthru
      _
    // Predicated region
    $region14: #{tpu_custom_call.1} parent=1 // pred_check
      _
    $region15: #{tpu_custom_call.1} parent=1 // pred_check_branch
      %24 = sbr.rel (0) target = $region17
    $region16: #{tpu_custom_call.1} parent=1 // pred_region
      _
    $region17: #{tpu_custom_call.1} parent=1 // pred_fallthru
      _
    // Predicated region
    $region18: #{tpu_custom_call.1} parent=1 // pred_check
      _
    $region19: #{tpu_custom_call.1} parent=1 // pred_check_branch
      %26 = sbr.rel (0) target = $region21
    $region20: #{tpu_custom_call.1} parent=1 // pred_region
      _
    $region21: #{tpu_custom_call.1} parent=1 // pred_fallthru
      _
    %v27 = vld [vmem:[%s0] sm:$0x1]
    %v28 = vld [vmem:[%s0 + $0x1] sm:$0x1]
    %v29 = vld [vmem:[%s1] sm:$0x3]
    %v30 = vld [vmem:[%s1 + $0x2] sm:$0x3]
    %v33 = vlaneseq
    %v34 = vshrl.u32 %v33, 7
    %v35 = vsub.s32 0, %v34
    %v36 = vrot.slane %v27, %v35
    %v37 = vlaneseq
    %v38 = vshrl.u32 %v37, 7
    %v39 = vsub.s32 0, %v38
    %v40 = vrot.slane %v28, %v39
    %41 = vset.pattern.permute.xlu0 0
    %42 = vperm.xlu0 %41, %v36
    %v43 = vpop.permute.xlu0 %42
    %45 = vset.pattern.permute.xlu0 0
    %46 = vperm.xlu0 %45, %v40
    %v47 = vpop.permute.xlu0 %46
    %v49 = vmul.f32 %v29, %v43
    %v50 = vmul.f32 %v30, %v47
    %51 = vst [vmem:[#allocation2] sm:$0x3] %v49
    %52 = vst [vmem:[#allocation2 + $0x2] sm:$0x3] %v50
    %v53 = vld [vmem:[%s2] sm:$0x3]
    %v54 = vld [vmem:[%s2 + $0x2] sm:$0x3]
    %v55 = vmul.f32 %v53, %v43
    %v56 = vmul.f32 %v54, %v47
    %57 = vst [vmem:[#allocation4] sm:$0x3] %v55
    %58 = vst [vmem:[#allocation4 + $0x2] sm:$0x3] %v56
    %v59 = vld [vmem:[%s3] sm:$0x3]
    %v60 = vld [vmem:[%s3 + $0x2] sm:$0x3]
    %v61 = vmul.f32 %v59, %v43
    %v62 = vmul.f32 %v60, %v47
    %63 = vst [vmem:[#allocation6] sm:$0x3] %v61
    %64 = vst [vmem:[#allocation6 + $0x2] sm:$0x3] %v62
    %v65 = vld [vmem:[%s4] sm:$0x3]
    %v66 = vld [vmem:[%s4 + $0x2] sm:$0x3]
    %v67 = vmul.f32 %v65, %v43
    %v68 = vmul.f32 %v66, %v47
    %69 = vst [vmem:[#allocation7] sm:$0x3] %v67
    %70 = vst [vmem:[#allocation7 + $0x2] sm:$0x3] %v68
    // Predicated region
    $region22: #{tpu_custom_call.1} parent=1 // pred_check
      _
    $region23: #{tpu_custom_call.1} parent=1 // pred_check_branch
      %72 = sbr.rel (0) target = $region25
    $region24: #{tpu_custom_call.1} parent=1 // pred_region
      %s74 = ssub.s32 64, 64
      %75 = vsyncadd [#allocation3], %s74
      %s76 = sshll.u32 [#allocation2], 4
      %s77 = int_to_ptr.vmem [resolvable:$true] %s76
      %82 = dma.vmem_to_hbm [thread:$0]  %s77, 64, %s5, [#allocation3], 32, 32, 2
    $region25: #{tpu_custom_call.1} parent=1 // pred_fallthru
      _
    // Predicated region
    $region26: #{tpu_custom_call.1} parent=1 // pred_check
      _
    $region27: #{tpu_custom_call.1} parent=1 // pred_check_branch
      %84 = sbr.rel (0) target = $region29
    $region28: #{tpu_custom_call.1} parent=1 // pred_region
      %s86 = ssub.s32 64, 64
      %87 = vsyncadd [#allocation5], %s86
      %s88 = sshll.u32 [#allocation4], 4
      %s89 = int_to_ptr.vmem [resolvable:$true] %s88
      %94 = dma.vmem_to_hbm [thread:$0]  %s89, 64, %s6, [#allocation5], 32, 32, 2
    $region29: #{tpu_custom_call.1} parent=1 // pred_fallthru
      _
    // Predicated region
    $region30: #{tpu_custom_call.1} parent=1 // pred_check
      _
    $region31: #{tpu_custom_call.1} parent=1 // pred_check_branch
      %96 = sbr.rel (0) target = $region33
    $region32: #{tpu_custom_call.1} parent=1 // pred_region
      %s98 = ssub.s32 64, 64
      %99 = vsyncadd [#allocation5], %s98
      %s100 = sshll.u32 [#allocation6], 4
      %s101 = int_to_ptr.vmem [resolvable:$true] %s100
      %106 = dma.vmem_to_hbm [thread:$0]  %s101, 64, %s7, [#allocation5], 32, 32, 2
    $region33: #{tpu_custom_call.1} parent=1 // pred_fallthru
      _
    // Predicated region
    $region34: #{tpu_custom_call.1} parent=1 // pred_check
      _
    $region35: #{tpu_custom_call.1} parent=1 // pred_check_branch
      %108 = sbr.rel (0) target = $region37
    $region36: #{tpu_custom_call.1} parent=1 // pred_region
      %s110 = ssub.s32 64, 64
      %111 = vsyncadd [#allocation8], %s110
      %s112 = sshll.u32 [#allocation7], 4
      %s113 = int_to_ptr.vmem [resolvable:$true] %s112
      %118 = dma.vmem_to_hbm [thread:$0]  %s113, 64, %s8, [#allocation8], 32, 32, 2
    $region37: #{tpu_custom_call.1} parent=1 // pred_fallthru
      _
    // Predicated region
    $region38: #{tpu_custom_call.1} parent=1 // pred_check
      _
    $region39: #{tpu_custom_call.1} parent=1 // pred_check_branch
      %120 = sbr.rel (0) target = $region41
    $region40: #{tpu_custom_call.1} parent=1 // pred_region
      %121 = dma.done [#allocation3], 64
    $region41: #{tpu_custom_call.1} parent=1 // pred_fallthru
      _
    // Predicated region
    $region42: #{tpu_custom_call.1} parent=1 // pred_check
      _
    $region43: #{tpu_custom_call.1} parent=1 // pred_check_branch
      %123 = sbr.rel (0) target = $region45
    $region44: #{tpu_custom_call.1} parent=1 // pred_region
      %124 = dma.done [#allocation5], 64
    $region45: #{tpu_custom_call.1} parent=1 // pred_fallthru
      _
    // Predicated region
    $region46: #{tpu_custom_call.1} parent=1 // pred_check
      _
    $region47: #{tpu_custom_call.1} parent=1 // pred_check_branch
      %126 = sbr.rel (0) target = $region49
    $region48: #{tpu_custom_call.1} parent=1 // pred_region
      %127 = dma.done [#allocation5], 64
    $region49: #{tpu_custom_call.1} parent=1 // pred_fallthru
      _
    // Predicated region
    $region50: #{tpu_custom_call.1} parent=1 // pred_check
      _
    $region51: #{tpu_custom_call.1} parent=1 // pred_check_branch
      %129 = sbr.rel (0) target = $region53
    $region52: #{tpu_custom_call.1} parent=1 // pred_region
      %130 = dma.done [#allocation8], 64
    $region53: #{tpu_custom_call.1} parent=1 // pred_fallthru
      _
    %131 = vsyncpa [#allocation3], 1
    %132 = vsyncpa [#allocation5], 1
    %133 = vsyncpa [#allocation8], 1

</llo_original>
